<compile_context>
chip_gen: v7x
topology: tpu7x:2x2x1
jax: 0.10.0
libtpu: 0.0.40
codegen_flags: <defaults>
</compile_context>

<pallas_src>
import jax
import jax.numpy as jnp
from jax import lax
from jax.experimental import pallas as pl
from jax.experimental.pallas import tpu as pltpu


def _skill_qnet_kernel(x_ref, w1_ref, b1_ref, w2_ref, b2_ref, w3_ref, b3_ref,
                       out_ref):
    # x:(TILE_B, in_dim) bf16   w1:(H, in_dim) bf16   b1:(H, 1) f32
    # w2:(H, H)          bf16   b2:(H, 1)      f32
    # w3:(1, H)          bf16   b3:(1, 1)      f32 (SMEM)   out:(1, TILE_B) f32

    # ---- layer 1: bf16 MXU matmul, A@B^T form -> (H, TILE_B), f32 accumulate ----
    h1 = lax.dot_general(
        w1_ref[...], x_ref[...],
        dimension_numbers=(((1,), (1,)), ((), ())),
        preferred_element_type=jnp.float32)
    h1 = jnp.maximum(h1 + b1_ref[...], 0.0)                    # f32 (H, TILE_B)

    # ---- layer 2: bf16 MXU matmul + f32 bias/ReLU ----
    h2 = jnp.dot(w2_ref[...], h1.astype(jnp.bfloat16),
                 preferred_element_type=jnp.float32)
    h2 = jnp.maximum(h2 + b2_ref[...], 0.0)                    # f32 (H, TILE_B)

    # ---- layer 3 (out_features == 1): (1,H)@(H,TILE_B) on the MXU ----
    q = jnp.dot(w3_ref[...], h2.astype(jnp.bfloat16),
                preferred_element_type=jnp.float32)            # (1, TILE_B)
    out_ref[...] = (q + b3_ref[0, 0]).astype(out_ref.dtype)    # lane-dense store


def skill_qnet_forward(obs, skill, action, params, *, tile_b=2048):
    """obs:(B,obs_dim) skill:(B,skill_dim) action:(B,action_dim) -> (B,1) f32."""
    w1, b1, w2, b2, w3, b3 = params
    B = obs.shape[0]
    hidden, in_dim = w1.shape

    # Concat once (layout plumbing) straight into bf16 — no transpose, no pad.
    x = jnp.concatenate([obs, skill, action], axis=-1).astype(jnp.bfloat16)

    # Weights in bf16 for the MXU; biases stay f32 (column vectors broadcast
    # along the lane/batch axis inside the kernel).
    w1b = w1.astype(jnp.bfloat16)                      # (H, in_dim)
    w2b = w2.astype(jnp.bfloat16)                      # (H, H)
    w3b = w3.reshape(1, hidden).astype(jnp.bfloat16)   # (1, H)
    b1c = b1.reshape(hidden, 1).astype(jnp.float32)
    b2c = b2.reshape(hidden, 1).astype(jnp.float32)
    b3c = b3.reshape(1, 1).astype(jnp.float32)

    # Batch tile: multiple of 128 lanes, capped so the grid has >= 2 steps
    # whenever the 128-padded batch allows it (v7x has 2 TensorCores).
    tile_b = max(128, (tile_b // 128) * 128)
    b_ceil = pl.cdiv(B, 128) * 128
    half_tile = pl.cdiv(pl.cdiv(b_ceil, 2), 128) * 128
    tile_b = min(tile_b, max(128, half_tile))
    n_tiles = pl.cdiv(B, tile_b)

    const = lambda a: pl.BlockSpec(a.shape, lambda i: (0, 0))  # VMEM-resident

    out = pl.pallas_call(
        _skill_qnet_kernel,
        out_shape=jax.ShapeDtypeStruct((1, B), jnp.float32),
        grid=(n_tiles,),
        in_specs=[
            pl.BlockSpec((tile_b, in_dim), lambda i: (i, 0)),   # x streamed over batch
            const(w1b), const(b1c), const(w2b), const(b2c), const(w3b),
            pl.BlockSpec(memory_space=pltpu.MemorySpace.SMEM),  # b3 scalar in SMEM
        ],
        out_specs=pl.BlockSpec((1, tile_b), lambda i: (0, i)),  # lane-dense output
        compiler_params=pltpu.CompilerParams(
            dimension_semantics=("parallel",),                  # megacore on v7x
            vmem_limit_bytes=48 << 20),                         # > v5e's 16 MiB default
    )(x, w1b, b1c, w2b, b2c, w3b, b3c)

    return out.reshape(B, 1)


def init_params(key, obs_dim, skill_dim, action_dim, hidden_dim=256):
    """PyTorch nn.Linear-style layouts and uniform(+-1/sqrt(fan_in)) init."""
    in_dim = obs_dim + skill_dim + action_dim
    ks = jax.random.split(key, 6)

    def uni(k, shape, fan_in):
        bound = 1.0 / jnp.sqrt(jnp.float32(fan_in))
        return jax.random.uniform(k, shape, jnp.float32, -bound, bound)

    w1 = uni(ks[0], (hidden_dim, in_dim), in_dim)
    b1 = uni(ks[1], (hidden_dim,), in_dim)
    w2 = uni(ks[2], (hidden_dim, hidden_dim), hidden_dim)
    b2 = uni(ks[3], (hidden_dim,), hidden_dim)
    w3 = uni(ks[4], (1, hidden_dim), hidden_dim)
    b3 = uni(ks[5], (1,), hidden_dim)
    return (w1, b1, w2, b2, w3, b3)


def skill_qnet_ref(obs, skill, action, params):
    """Pure-JAX f32 reference (mirrors the PyTorch forward)."""
    w1, b1, w2, b2, w3, b3 = params
    x = jnp.concatenate([obs, skill, action], axis=-1)
    h1 = jnp.maximum(x @ w1.T + b1, 0.0)
    h2 = jnp.maximum(h1 @ w2.T + b2, 0.0)
    return h2 @ w3.T + b3


if __name__ == "__main__":
    # Small shapes; B deliberately not a multiple of 128 to exercise the ragged
    # last batch block, and small enough that the two-tile clamp kicks in.
    B, OBS, SKILL, ACT, HID = 200, 12, 8, 4, 256

    key = jax.random.PRNGKey(0)
    k_obs, k_skill, k_act, k_par = jax.random.split(key, 4)

    obs = jax.random.normal(k_obs, (B, OBS), jnp.float32)
    skill = jax.random.normal(k_skill, (B, SKILL), jnp.float32)
    action = jax.random.normal(k_act, (B, ACT), jnp.float32)
    params = init_params(k_par, OBS, SKILL, ACT, HID)

    forward = jax.jit(skill_qnet_forward, static_argnames=("tile_b",))
    q = forward(obs, skill, action, params)
    q = jax.block_until_ready(q)

    q_ref = skill_qnet_ref(obs, skill, action, params)
    assert q.shape == (B, 1), q.shape
    # bf16 matmuls => looser tolerance vs. the f32 reference.
    max_err = jnp.max(jnp.abs(q - q_ref))
    assert jnp.allclose(q, q_ref, atol=2e-2, rtol=2e-2), (max_err, q[:4], q_ref[:4])

    print("KERNEL_OK")
</pallas_src>

<mosaic_0001>
module attributes {stable_mosaic.version = 11 : i64} {
  func.func @_skill_qnet_kernel(%arg0: i32, %arg1: memref<128x24xbf16, #tpu.memory_space<vmem>>, %arg2: memref<256x24xbf16, #tpu.memory_space<vmem>>, %arg3: memref<256x1xf32, #tpu.memory_space<vmem>>, %arg4: memref<256x256xbf16, #tpu.memory_space<vmem>>, %arg5: memref<256x1xf32, #tpu.memory_space<vmem>>, %arg6: memref<1x256xbf16, #tpu.memory_space<vmem>>, %arg7: memref<1x1xf32, #tpu.memory_space<smem>>, %arg8: memref<1x128xf32, #tpu.memory_space<vmem>>) attributes {dimension_semantics = [#tpu.dimension_semantics<parallel>], iteration_bounds = array<i64: 2>, scalar_prefetch = 0 : i64, scratch_operands = 0 : i64, tpu.core_type = #tpu.core_type<tc>, window_params = [{transform_indices = @transform_0, window_bounds = array<i64: 128, 24>}, {pipeline_mode = #tpu.pipeline_mode<synchronous>, transform_indices = @transform_1, window_bounds = array<i64: 256, 24>}, {pipeline_mode = #tpu.pipeline_mode<synchronous>, transform_indices = @transform_2, window_bounds = array<i64: 256, 1>}, {pipeline_mode = #tpu.pipeline_mode<synchronous>, transform_indices = @transform_3, window_bounds = array<i64: 256, 256>}, {pipeline_mode = #tpu.pipeline_mode<synchronous>, transform_indices = @transform_4, window_bounds = array<i64: 256, 1>}, {pipeline_mode = #tpu.pipeline_mode<synchronous>, transform_indices = @transform_5, window_bounds = array<i64: 1, 256>}, {transform_indices = @transform_6, window_bounds = array<i64: 1, 1>}, {transform_indices = @transform_7, window_bounds = array<i64: 1, 128>}]} {
    %c0 = arith.constant 0 : index
    %c0_0 = arith.constant 0 : index
    %0 = vector.load %arg2[%c0, %c0_0] : memref<256x24xbf16, #tpu.memory_space<vmem>>, vector<256x24xbf16>
    %c0_1 = arith.constant 0 : index
    %c0_2 = arith.constant 0 : index
    %1 = vector.load %arg1[%c0_1, %c0_2] : memref<128x24xbf16, #tpu.memory_space<vmem>>, vector<128x24xbf16>
    %cst = arith.constant dense<0.000000e+00> : vector<256x128xf32>
    %2 = tpu.matmul %0, %1, %cst {dimension_numbers = #tpu.dot_dimension_numbers<[1], [1], [0], [0], [0, 0, 1, 0], [], []>} : vector<256x24xbf16>, vector<128x24xbf16>, vector<256x128xf32> -> vector<256x128xf32>
    %c0_3 = arith.constant 0 : index
    %c0_4 = arith.constant 0 : index
    %3 = vector.load %arg3[%c0_3, %c0_4] : memref<256x1xf32, #tpu.memory_space<vmem>>, vector<256x1xf32>
    %4 = vector.broadcast %3 : vector<256x1xf32> to vector<256x128xf32>
    %5 = arith.addf %2, %4 : vector<256x128xf32>
    %cst_5 = arith.constant 0.000000e+00 : f32
    %6 = vector.broadcast %cst_5 : f32 to vector<256x128xf32>
    %7 = arith.maximumf %5, %6 : vector<256x128xf32>
    %c0_6 = arith.constant 0 : index
    %c0_7 = arith.constant 0 : index
    %8 = vector.load %arg4[%c0_6, %c0_7] : memref<256x256xbf16, #tpu.memory_space<vmem>>, vector<256x256xbf16>
    %9 = arith.truncf %7 : vector<256x128xf32> to vector<256x128xbf16>
    %cst_8 = arith.constant dense<0.000000e+00> : vector<256x128xf32>
    %10 = tpu.matmul %8, %9, %cst_8 {dimension_numbers = #tpu.dot_dimension_numbers<[1], [0], [0], [1], [0, 0, 1, 1], [], []>} : vector<256x256xbf16>, vector<256x128xbf16>, vector<256x128xf32> -> vector<256x128xf32>
    %c0_9 = arith.constant 0 : index
    %c0_10 = arith.constant 0 : index
    %11 = vector.load %arg5[%c0_9, %c0_10] : memref<256x1xf32, #tpu.memory_space<vmem>>, vector<256x1xf32>
    %12 = vector.broadcast %11 : vector<256x1xf32> to vector<256x128xf32>
    %13 = arith.addf %10, %12 : vector<256x128xf32>
    %cst_11 = arith.constant 0.000000e+00 : f32
    %14 = vector.broadcast %cst_11 : f32 to vector<256x128xf32>
    %15 = arith.maximumf %13, %14 : vector<256x128xf32>
    %c0_12 = arith.constant 0 : index
    %c0_13 = arith.constant 0 : index
    %16 = vector.load %arg6[%c0_12, %c0_13] : memref<1x256xbf16, #tpu.memory_space<vmem>>, vector<1x256xbf16>
    %17 = arith.truncf %15 : vector<256x128xf32> to vector<256x128xbf16>
    %cst_14 = arith.constant dense<0.000000e+00> : vector<1x128xf32>
    %18 = tpu.matmul %16, %17, %cst_14 {dimension_numbers = #tpu.dot_dimension_numbers<[1], [0], [0], [1], [0, 0, 1, 1], [], []>} : vector<1x256xbf16>, vector<256x128xbf16>, vector<1x128xf32> -> vector<1x128xf32>
    %c0_15 = arith.constant 0 : index
    %c0_16 = arith.constant 0 : index
    %19 = memref.load %arg7[%c0_15, %c0_16] : memref<1x1xf32, #tpu.memory_space<smem>>
    %20 = vector.broadcast %19 : f32 to vector<1x128xf32>
    %21 = arith.addf %18, %20 : vector<1x128xf32>
    %c0_17 = arith.constant 0 : index
    %c0_18 = arith.constant 0 : index
    %22 = vector.load %arg8[%c0_17, %c0_18] : memref<1x128xf32, #tpu.memory_space<vmem>>, vector<1x128xf32>
    tpu.vector_store %arg8[%c0_17, %c0_18], %21 {strides = array<i32>} : memref<1x128xf32, #tpu.memory_space<vmem>>, vector<1x128xf32>,
    return
  }
  func.func @transform_0(%arg0: i32) -> (i32, i32) {
    %c0_i32 = arith.constant 0 : i32
    %c0_i32_0 = arith.constant 0 : i32
    return %arg0, %c0_i32 : i32, i32
  }
  func.func @transform_1(%arg0: i32) -> (i32, i32) {
    %c0_i32 = arith.constant 0 : i32
    %c0_i32_0 = arith.constant 0 : i32
    %c0_i32_1 = arith.constant 0 : i32
    return %c0_i32, %c0_i32_0 : i32, i32
  }
  func.func @transform_2(%arg0: i32) -> (i32, i32) {
    %c0_i32 = arith.constant 0 : i32
    %c0_i32_0 = arith.constant 0 : i32
    %c0_i32_1 = arith.constant 0 : i32
    return %c0_i32, %c0_i32_0 : i32, i32
  }
  func.func @transform_3(%arg0: i32) -> (i32, i32) {
    %c0_i32 = arith.constant 0 : i32
    %c0_i32_0 = arith.constant 0 : i32
    %c0_i32_1 = arith.constant 0 : i32
    return %c0_i32, %c0_i32_0 : i32, i32
  }
  func.func @transform_4(%arg0: i32) -> (i32, i32) {
    %c0_i32 = arith.constant 0 : i32
    %c0_i32_0 = arith.constant 0 : i32
    %c0_i32_1 = arith.constant 0 : i32
    return %c0_i32, %c0_i32_0 : i32, i32
  }
  func.func @transform_5(%arg0: i32) -> (i32, i32) {
    %c0_i32 = arith.constant 0 : i32
    %c0_i32_0 = arith.constant 0 : i32
    %c0_i32_1 = arith.constant 0 : i32
    return %c0_i32, %c0_i32_0 : i32, i32
  }
  func.func @transform_6(%arg0: i32) -> (i32, i32) {
    %c0_i32 = arith.constant 0 : i32
    %c0_i32_0 = arith.constant 0 : i32
    %c0_i32_1 = arith.constant 0 : i32
    return %c0_i32, %c0_i32_0 : i32, i32
  }
  func.func @transform_7(%arg0: i32) -> (i32, i32) {
    %c0_i32 = arith.constant 0 : i32
    %c0_i32_0 = arith.constant 0 : i32
    return %c0_i32, %arg0 : i32, i32
  }
}

</mosaic_0001>

<llo_original>
// kernel: skill_qnet_forward.1
$region0: #{skill_qnet_forward.1}
  #allocation0 [shape = 'u32[]', space=smem, size = 0x4, offset = 0x4, fixed_abs, tag = 'smem constant byte address 0x4 - core index']
  #allocation1 [shape = 'u32[144,128]{1,0:T(1,128)}', space=vmem, size = 0x12000, scoped, tag = 'internal scratch']
  #allocation2 [shape = 'f32[1,1]{1,0:T(1,128)S(6)}', space=smem, size = 0x200, scoped, tag = 'scoped memory for skill_qnet_forward.1']
  %s0 = inlined_call_operand.vmem [shape: bf16[200,24], index: 0, kind: input, shape index: {}]
  %s1 = inlined_call_operand.vmem [shape: bf16[256,24], index: 1, kind: input, shape index: {}]
  %s2 = inlined_call_operand.vmem [shape: f32[256,1], index: 2, kind: input, shape index: {}]
  %s3 = inlined_call_operand.vmem [shape: bf16[256,256], index: 3, kind: input, shape index: {}]
  %s4 = inlined_call_operand.vmem [shape: f32[256,1], index: 4, kind: input, shape index: {}]
  %s5 = inlined_call_operand.vmem [shape: bf16[1,256], index: 5, kind: input, shape index: {}]
  %s6 = inlined_call_operand.<no memory space> [shape: f32[1,1], index: 6, kind: input, shape index: {}]
  %s7 = inlined_call_operand.hbm [shape: f32[1,200], index: 7, kind: output, shape index: {}]
  %s8 = sld [smem:[#allocation0]]
  $region61: #{skill_qnet_forward.1} parent=0
    _
  %s10 = ssub.s32 1, %s8
  %s11 = scalar_select 0, %s10, %s8
  %12 = sst [smem:[#allocation2]] %s6
  $region1: #{skill_qnet_forward.1} parent=0
    #allocation3 [shape = 'u8[1024]{0}', space=vmem, size = 0x400, scoped, tag = 'output window, operand 0']
    #allocation4 [shape = 's32[2]{0}', space=sflag, size = 0x8, scoped, tag = 'scoped memory for skill_qnet_forward.1']
    %13 = vsyncpa [#allocation4], 0
    %s14 = scalar_lea.sflag [#allocation4], 1
    %15 = vsyncpa %s14, 0
    loop: start=0, step=1, limit=4
    $region2: #{skill_qnet_forward.1} parent=1 // loop_pre_header
      _
    $region3: #{skill_qnet_forward.1} parent=1 // loop_header
      %s17 = sphi 0, %s21
      %p18 = scmp.ge.s32.totalorder %s17, 4
      %s27 = sphi 0, %s29
      %s30 = sphi 0, %s27
      %s31 = sphi 0, %s30
      %s47 = sphi 0, %s31
      %s51 = sphi 0, %s51
      %s53 = sphi 0, %s51
      %s54 = sphi 0, %s53
      %s68 = sphi 0, %s54
      %s72 = sphi 0, %s72
      %s74 = sphi 0, %s72
      %s75 = sphi 0, %s74
      %s89 = sphi 0, %s75
      %s93 = sphi 0, %s93
      %s95 = sphi 0, %s93
      %s96 = sphi 0, %s95
      %s110 = sphi 0, %s96
      %s114 = sphi 0, %s114
      %s116 = sphi 0, %s114
      %s117 = sphi 0, %s116
      %s131 = sphi 0, %s117
      %s135 = sphi 0, %s135
      %s137 = sphi 0, %s135
      %s138 = sphi 0, %s137
      %s152 = sphi 0, %s138
      %s156 = sphi 0, %s156
      %s158 = sphi 0, %s156
      %s159 = sphi 0, %s158
      %s173 = sphi 0, %s159
      %s179 = sphi 0, %s181
      %s182 = sphi 0, %s179
      %s183 = sphi 0, %s182
      %s199 = sphi 0, %s183
    $region4: #{skill_qnet_forward.1} parent=1 // loop_header_branch
      %20 = sbr.rel (%p18) target = $region8
    $region5: #{skill_qnet_forward.1} parent=1 // loop_body
      %s22 = ssub.s32 %s17, 1
      %s23 = ssub.s32 %s17, 2
      %s24 = sadd.s32 %s17, 1
      %s25 = ssub.s32 %s17, %s24
      %p26 = scmp.eq.s32.totalorder %s25, 0
      %s28 = sadd.s32 %s27, 1
      %s29 = scalar_select %p26, %s27, %s28
      %p32 = pneg %p26
      %p33 = scmp.eq.s32.totalorder %s17, 1
      %p34 = por %p32, %p33
      %p35 = scmp.ne.s32.totalorder %s27, %s30
      %p36 = scmp.eq.s32.totalorder %s17, 0
      %p37 = por %p35, %p36
      %p38 = scmp.ne.s32.totalorder %s27, %s30
      %p39 = scmp.eq.s32.totalorder %s22, 1
      %p40 = por %p38, %p39
      %p41 = scmp.ne.s32.totalorder %s30, %s31
      %p42 = scmp.eq.s32.totalorder %s22, 0
      %p43 = por %p41, %p42
      %p44 = scmp.ne.s32.totalorder %s30, %s31
      %p45 = scmp.eq.s32.totalorder %s23, 1
      %p46 = por %p44, %p45
      %p48 = scmp.ne.s32.totalorder %s31, %s47
      %p49 = scmp.eq.s32.totalorder %s23, 0
      %p50 = por %p48, %p49
      %s52 = sadd.s32 %s51, 1
      %p55 = scmp.eq.s32.totalorder %s17, 1
      %p56 = scmp.ne.s32.totalorder %s51, %s53
      %p57 = scmp.eq.s32.totalorder %s17, 0
      %p58 = por %p56, %p57
      %p59 = scmp.ne.s32.totalorder %s51, %s53
      %p60 = scmp.eq.s32.totalorder %s22, 1
      %p61 = por %p59, %p60
      %p62 = scmp.ne.s32.totalorder %s53, %s54
      %p63 = scmp.eq.s32.totalorder %s22, 0
      %p64 = por %p62, %p63
      %p65 = scmp.ne.s32.totalorder %s53, %s54
      %p66 = scmp.eq.s32.totalorder %s23, 1
      %p67 = por %p65, %p66
      %p69 = scmp.ne.s32.totalorder %s54, %s68
      %p70 = scmp.eq.s32.totalorder %s23, 0
      %p71 = por %p69, %p70
      %s73 = sadd.s32 %s72, 1
      %p76 = scmp.eq.s32.totalorder %s17, 1
      %p77 = scmp.ne.s32.totalorder %s72, %s74
      %p78 = scmp.eq.s32.totalorder %s17, 0
      %p79 = por %p77, %p78
      %p80 = scmp.ne.s32.totalorder %s72, %s74
      %p81 = scmp.eq.s32.totalorder %s22, 1
      %p82 = por %p80, %p81
      %p83 = scmp.ne.s32.totalorder %s74, %s75
      %p84 = scmp.eq.s32.totalorder %s22, 0
      %p85 = por %p83, %p84
      %p86 = scmp.ne.s32.totalorder %s74, %s75
      %p87 = scmp.eq.s32.totalorder %s23, 1
      %p88 = por %p86, %p87
      %p90 = scmp.ne.s32.totalorder %s75, %s89
      %p91 = scmp.eq.s32.totalorder %s23, 0
      %p92 = por %p90, %p91
      %s94 = sadd.s32 %s93, 1
      %p97 = scmp.eq.s32.totalorder %s17, 1
      %p98 = scmp.ne.s32.totalorder %s93, %s95
      %p99 = scmp.eq.s32.totalorder %s17, 0
      %p100 = por %p98, %p99
      %p101 = scmp.ne.s32.totalorder %s93, %s95
      %p102 = scmp.eq.s32.totalorder %s22, 1
      %p103 = por %p101, %p102
      %p104 = scmp.ne.s32.totalorder %s95, %s96
      %p105 = scmp.eq.s32.totalorder %s22, 0
      %p106 = por %p104, %p105
      %p107 = scmp.ne.s32.totalorder %s95, %s96
      %p108 = scmp.eq.s32.totalorder %s23, 1
      %p109 = por %p107, %p108
      %p111 = scmp.ne.s32.totalorder %s96, %s110
      %p112 = scmp.eq.s32.totalorder %s23, 0
      %p113 = por %p111, %p112
      %s115 = sadd.s32 %s114, 1
      %p118 = scmp.eq.s32.totalorder %s17, 1
      %p119 = scmp.ne.s32.totalorder %s114, %s116
      %p120 = scmp.eq.s32.totalorder %s17, 0
      %p121 = por %p119, %p120
      %p122 = scmp.ne.s32.totalorder %s114, %s116
      %p123 = scmp.eq.s32.totalorder %s22, 1
      %p124 = por %p122, %p123
      %p125 = scmp.ne.s32.totalorder %s116, %s117
      %p126 = scmp.eq.s32.totalorder %s22, 0
      %p127 = por %p125, %p126
      %p128 = scmp.ne.s32.totalorder %s116, %s117
      %p129 = scmp.eq.s32.totalorder %s23, 1
      %p130 = por %p128, %p129
      %p132 = scmp.ne.s32.totalorder %s117, %s131
      %p133 = scmp.eq.s32.totalorder %s23, 0
      %p134 = por %p132, %p133
      %s136 = sadd.s32 %s135, 1
      %p139 = scmp.eq.s32.totalorder %s17, 1
      %p140 = scmp.ne.s32.totalorder %s135, %s137
      %p141 = scmp.eq.s32.totalorder %s17, 0
      %p142 = por %p140, %p141
      %p143 = scmp.ne.s32.totalorder %s135, %s137
      %p144 = scmp.eq.s32.totalorder %s22, 1
      %p145 = por %p143, %p144
      %p146 = scmp.ne.s32.totalorder %s137, %s138
      %p147 = scmp.eq.s32.totalorder %s22, 0
      %p148 = por %p146, %p147
      %p149 = scmp.ne.s32.totalorder %s137, %s138
      %p150 = scmp.eq.s32.totalorder %s23, 1
      %p151 = por %p149, %p150
      %p153 = scmp.ne.s32.totalorder %s138, %s152
      %p154 = scmp.eq.s32.totalorder %s23, 0
      %p155 = por %p153, %p154
      %s157 = sadd.s32 %s156, 1
      %p160 = scmp.eq.s32.totalorder %s17, 1
      %p161 = scmp.ne.s32.totalorder %s156, %s158
      %p162 = scmp.eq.s32.totalorder %s17, 0
      %p163 = por %p161, %p162
      %p164 = scmp.ne.s32.totalorder %s156, %s158
      %p165 = scmp.eq.s32.totalorder %s22, 1
      %p166 = por %p164, %p165
      %p167 = scmp.ne.s32.totalorder %s158, %s159
      %p168 = scmp.eq.s32.totalorder %s22, 0
      %p169 = por %p167, %p168
      %p170 = scmp.ne.s32.totalorder %s158, %s159
      %p171 = scmp.eq.s32.totalorder %s23, 1
      %p172 = por %p170, %p171
      %p174 = scmp.ne.s32.totalorder %s159, %s173
      %p175 = scmp.eq.s32.totalorder %s23, 0
      %p176 = por %p174, %p175
      %s177 = ssub.s32 %s17, %s24
      %p178 = scmp.eq.s32.totalorder %s177, 0
      %s180 = sadd.s32 %s179, 1
      %s181 = scalar_select %p178, %s179, %s180
      %p184 = pneg %p178
      %p185 = scmp.eq.s32.totalorder %s17, 1
      %p186 = por %p184, %p185
      %p187 = scmp.ne.s32.totalorder %s179, %s182
      %p188 = scmp.eq.s32.totalorder %s17, 0
      %p189 = por %p187, %p188
      %p190 = scmp.ne.s32.totalorder %s179, %s182
      %p191 = scmp.eq.s32.totalorder %s22, 1
      %p192 = por %p190, %p191
      %p193 = scmp.ne.s32.totalorder %s182, %s183
      %p194 = scmp.eq.s32.totalorder %s22, 0
      %p195 = por %p193, %p194
      %p196 = scmp.ne.s32.totalorder %s182, %s183
      %p197 = scmp.eq.s32.totalorder %s23, 1
      %p198 = por %p196, %p197
      %p200 = scmp.ne.s32.totalorder %s183, %s199
      %p201 = scmp.eq.s32.totalorder %s23, 0
      %p202 = por %p200, %p201
      %p203 = scmp.le.s32.totalorder 1, %s17
      %p204 = scmp.lt.s32.totalorder %s17, 3
      %p205 = pnand %p203, %p204
      %p206 = pneg %p205
      // Predicated region
      $region9: #{skill_qnet_forward.1} parent=5 // pred_check
        _
      $region10: #{skill_qnet_forward.1} parent=5 // pred_check_branch
        %208 = sbr.rel (%p205) target = $region12
      $region11: #{skill_qnet_forward.1} parent=5 // pred_region
        %s209 = ssub.s32 %s17, 1
        // Predicated region
        $region13: #{skill_qnet_forward.1} parent=11 // pred_check
          %p210 = pneg %p64
        $region14: #{skill_qnet_forward.1} parent=11 // pred_check_branch
          %212 = sbr.rel (%p210) target = $region16
        $region15: #{skill_qnet_forward.1} parent=11 // pred_region
          _
        $region16: #{skill_qnet_forward.1} parent=11 // pred_fallthru
          _
        // Predicated region
        $region17: #{skill_qnet_forward.1} parent=11 // pred_check
          %p213 = pneg %p85
        $region18: #{skill_qnet_forward.1} parent=11 // pred_check_branch
          %215 = sbr.rel (%p213) target = $region20
        $region19: #{skill_qnet_forward.1} parent=11 // pred_region
          _
        $region20: #{skill_qnet_forward.1} parent=11 // pred_fallthru
          _
        // Predicated region
        $region21: #{skill_qnet_forward.1} parent=11 // pred_check
          %p216 = pneg %p106
        $region22: #{skill_qnet_forward.1} parent=11 // pred_check_branch
          %218 = sbr.rel (%p216) target = $region24
        $region23: #{skill_qnet_forward.1} parent=11 // pred_region
          _
        $region24: #{skill_qnet_forward.1} parent=11 // pred_fallthru
          _
        // Predicated region
        $region25: #{skill_qnet_forward.1} parent=11 // pred_check
          %p219 = pneg %p127
        $region26: #{skill_qnet_forward.1} parent=11 // pred_check_branch
          %221 = sbr.rel (%p219) target = $region28
        $region27: #{skill_qnet_forward.1} parent=11 // pred_region
          _
        $region28: #{skill_qnet_forward.1} parent=11 // pred_fallthru
          _
        // Predicated region
        $region29: #{skill_qnet_forward.1} parent=11 // pred_check
          %p222 = pneg %p148
        $region30: #{skill_qnet_forward.1} parent=11 // pred_check_branch
          %224 = sbr.rel (%p222) target = $region32
        $region31: #{skill_qnet_forward.1} parent=11 // pred_region
          _
        $region32: #{skill_qnet_forward.1} parent=11 // pred_fallthru
          _
        // Predicated region
        $region33: #{skill_qnet_forward.1} parent=11 // pred_check
          %p225 = pneg %p169
        $region34: #{skill_qnet_forward.1} parent=11 // pred_check_branch
          %227 = sbr.rel (%p225) target = $region36
        $region35: #{skill_qnet_forward.1} parent=11 // pred_region
          _
        $region36: #{skill_qnet_forward.1} parent=11 // pred_fallthru
          _
      $region12: #{skill_qnet_forward.1} parent=5 // pred_fallthru
        _
      %p228 = scmp.lt.s32.totalorder %s17, 2
      // Predicated region
      $region37: #{skill_qnet_forward.1} parent=5 // pred_check
        %p229 = pneg %p228
      $region38: #{skill_qnet_forward.1} parent=5 // pred_check_branch
        %231 = sbr.rel (%p229) target = $region40
      $region39: #{skill_qnet_forward.1} parent=5 // pred_region
        // Predicated region
        $region41: #{skill_qnet_forward.1} parent=39 // pred_check
          %p232 = pneg %p37
        $region42: #{skill_qnet_forward.1} parent=39 // pred_check_branch
          %234 = sbr.rel (%p232) target = $region44
        $region43: #{skill_qnet_forward.1} parent=39 // pred_region
          %s235 = smul.u32 16, %s17
          %s236 = ssub.s32 25, %s235
          %p237 = scmp.lt.s32.totalorder %s236, 16
          %s238 = scalar_select %p237, %s236, 16
          %s239 = smul.u32 64, %s238
          %p240 = scmp.lt.s32.totalorder %s235, 24
          %s241 = scalar_select %p240, %s235, 24
          %s242 = smul.addr %s241, 4
          %s243 = scalar_lea.vmem %s0, %s242
          %s244 = smul.u32 16, %s17
          %s245 = ssub.s32 25, %s244
          %p246 = scmp.lt.s32.totalorder %s245, 16
          %s247 = scalar_select %p246, %s245, 16
          %s248 = smul.u32 64, %s247
        $region44: #{skill_qnet_forward.1} parent=39 // pred_fallthru
          _
      $region40: #{skill_qnet_forward.1} parent=5 // pred_fallthru
        _
      %p249 = scmp.le.s32.totalorder 1, %s17
      %p250 = scmp.lt.s32.totalorder %s17, 3
      %p251 = pnand %p249, %p250
      %p252 = pneg %p251
      // Predicated region
      $region45: #{skill_qnet_forward.1} parent=5 // pred_check
        _
      $region46: #{skill_qnet_forward.1} parent=5 // pred_check_branch
        %254 = sbr.rel (%p251) target = $region48
      $region47: #{skill_qnet_forward.1} parent=5 // pred_region
        %s255 = ssub.s32 %s17, 1
        %s256 = smul.u32 16, %s22
        %s257 = ssub.s32 25, %s256
        %p258 = scmp.lt.s32.totalorder %s257, 16
        %s259 = scalar_select %p258, %s257, 16
        %s260 = smul.u32 64, %s259
        %p261 = scmp.lt.s32.totalorder %s256, 24
        %s262 = scalar_select %p261, %s256, 24
        %s263 = smul.addr %s262, 4
        %s264 = scalar_lea.vmem %s0, %s263
        %p265 = pneg %p43
        %p266 = pneg %p40
        %p267 = pneg %p64
        %p268 = pneg %p61
        %p269 = pneg %p85
        %p270 = pneg %p82
        %p271 = pneg %p106
        %p272 = pneg %p103
        %p273 = pneg %p127
        %p274 = pneg %p124
        %p275 = pneg %p148
        %p276 = pneg %p145
        %p277 = pneg %p169
        %p278 = pneg %p166
        %p279 = pneg %p195
        %p280 = pneg %p192
        %s281 = sand.u32 %s182, 1
        %s282 = scalar_lea.sflag [#allocation4], %s281
        %s283 = sand.u32 %s182, 1
        %s284 = scalar_lea.vmem [#allocation3], %s283
        %s285 = smul.u32 16, %s22
        %s286 = ssub.s32 25, %s285
        %p287 = scmp.lt.s32.totalorder %s286, 16
        %s288 = scalar_select %p287, %s286, 16
        %s289 = smul.u32 64, %s288
        %p290 = scmp.lt.s32.totalorder %s285, 24
        %s291 = scalar_select %p290, %s285, 24
        %s292 = smul.addr %s291, 4
        %s293 = scalar_lea.vmem %s0, %s292
        %s294 = smul.u32 16, %s22
        %s295 = ssub.s32 25, %s294
        %p296 = scmp.lt.s32.totalorder %s295, 16
        %s297 = scalar_select %p296, %s295, 16
        %s298 = smul.u32 64, %s297
        %v300 = vld [vmem:[%s1] sm:$0xf]
        %v301 = vld [vmem:[%s1 + $0x4] sm:$0xf]
        %v302 = vld [vmem:[%s1 + $0x8] sm:$0xf]
        %v303 = vld [vmem:[%s1 + $0xc] sm:$0xf]
        %v304 = vld [vmem:[%s1 + $0x10] sm:$0xf]
        %v305 = vld [vmem:[%s1 + $0x14] sm:$0xf]
        %v306 = vld [vmem:[%s1 + $0x18] sm:$0xf]
        %v307 = vld [vmem:[%s1 + $0x1c] sm:$0xf]
        %v308 = vld [vmem:[%s1 + $0x20] sm:$0xf]
        %v309 = vld [vmem:[%s1 + $0x24] sm:$0xf]
        %v310 = vld [vmem:[%s1 + $0x28] sm:$0xf]
        %v311 = vld [vmem:[%s1 + $0x2c] sm:$0xf]
        %v312 = vld [vmem:[%s1 + $0x30] sm:$0xf]
        %v313 = vld [vmem:[%s1 + $0x34] sm:$0xf]
        %v314 = vld [vmem:[%s1 + $0x38] sm:$0xf]
        %v315 = vld [vmem:[%s1 + $0x3c] sm:$0xf]
        %v316 = vld [vmem:[%s1 + $0x40] sm:$0xf]
        %v317 = vld [vmem:[%s1 + $0x44] sm:$0xf]
        %v318 = vld [vmem:[%s1 + $0x48] sm:$0xf]
        %v319 = vld [vmem:[%s1 + $0x4c] sm:$0xf]
        %v320 = vld [vmem:[%s1 + $0x50] sm:$0xf]
        %v321 = vld [vmem:[%s1 + $0x54] sm:$0xf]
        %v322 = vld [vmem:[%s1 + $0x58] sm:$0xf]
        %v323 = vld [vmem:[%s1 + $0x5c] sm:$0xf]
        %v324 = vld [vmem:[%s1 + $0x60] sm:$0xf]
        %v325 = vld [vmem:[%s1 + $0x64] sm:$0xf]
        %v326 = vld [vmem:[%s1 + $0x68] sm:$0xf]
        %v327 = vld [vmem:[%s1 + $0x6c] sm:$0xf]
        %v328 = vld [vmem:[%s1 + $0x70] sm:$0xf]
        %v329 = vld [vmem:[%s1 + $0x74] sm:$0xf]
        %v330 = vld [vmem:[%s1 + $0x78] sm:$0xf]
        %v331 = vld [vmem:[%s1 + $0x7c] sm:$0xf]
        %v332 = vld [vmem:[%s293] sm:$0xf]
        %v333 = vld [vmem:[%s293 + $0x4] sm:$0xf]
        %v334 = vld [vmem:[%s293 + $0x8] sm:$0xf]
        %v335 = vld [vmem:[%s293 + $0xc] sm:$0xf]
        %v336 = vld [vmem:[%s293 + $0x10] sm:$0xf]
        %v337 = vld [vmem:[%s293 + $0x14] sm:$0xf]
        %v338 = vld [vmem:[%s293 + $0x18] sm:$0xf]
        %v339 = vld [vmem:[%s293 + $0x1c] sm:$0xf]
        %v340 = vld [vmem:[%s293 + $0x20] sm:$0xf]
        %v341 = vld [vmem:[%s293 + $0x24] sm:$0xf]
        %v342 = vld [vmem:[%s293 + $0x28] sm:$0xf]
        %v343 = vld [vmem:[%s293 + $0x2c] sm:$0xf]
        %v344 = vld [vmem:[%s293 + $0x30] sm:$0xf]
        %v345 = vld [vmem:[%s293 + $0x34] sm:$0xf]
        %v346 = vld [vmem:[%s293 + $0x38] sm:$0xf]
        %v347 = vld [vmem:[%s293 + $0x3c] sm:$0xf]
        %v348 = vld [vmem:[%s2] sm:$0xff]
        %v349 = vld [vmem:[%s2 + $0x8] sm:$0xff]
        %v350 = vld [vmem:[%s2 + $0x10] sm:$0xff]
        %v351 = vld [vmem:[%s2 + $0x18] sm:$0xff]
        %v352 = vld [vmem:[%s2 + $0x20] sm:$0xff]
        %v353 = vld [vmem:[%s2 + $0x28] sm:$0xff]
        %v354 = vld [vmem:[%s2 + $0x30] sm:$0xff]
        %v355 = vld [vmem:[%s2 + $0x38] sm:$0xff]
        %v356 = vld [vmem:[%s2 + $0x40] sm:$0xff]
        %v357 = vld [vmem:[%s2 + $0x48] sm:$0xff]
        %v358 = vld [vmem:[%s2 + $0x50] sm:$0xff]
        %v359 = vld [vmem:[%s2 + $0x58] sm:$0xff]
        %v360 = vld [vmem:[%s2 + $0x60] sm:$0xff]
        %v361 = vld [vmem:[%s2 + $0x68] sm:$0xff]
        %v362 = vld [vmem:[%s2 + $0x70] sm:$0xff]
        %v363 = vld [vmem:[%s2 + $0x78] sm:$0xff]
        %v364 = vld [vmem:[%s2 + $0x80] sm:$0xff]
        %v365 = vld [vmem:[%s2 + $0x88] sm:$0xff]
        %v366 = vld [vmem:[%s2 + $0x90] sm:$0xff]
        %v367 = vld [vmem:[%s2 + $0x98] sm:$0xff]
        %v368 = vld [vmem:[%s2 + $0xa0] sm:$0xff]
        %v369 = vld [vmem:[%s2 + $0xa8] sm:$0xff]
        %v370 = vld [vmem:[%s2 + $0xb0] sm:$0xff]
        %v371 = vld [vmem:[%s2 + $0xb8] sm:$0xff]
        %v372 = vld [vmem:[%s2 + $0xc0] sm:$0xff]
        %v373 = vld [vmem:[%s2 + $0xc8] sm:$0xff]
        %v374 = vld [vmem:[%s2 + $0xd0] sm:$0xff]
        %v375 = vld [vmem:[%s2 + $0xd8] sm:$0xff]
        %v376 = vld [vmem:[%s2 + $0xe0] sm:$0xff]
        %v377 = vld [vmem:[%s2 + $0xe8] sm:$0xff]
        %v378 = vld [vmem:[%s2 + $0xf0] sm:$0xff]
        %v379 = vld [vmem:[%s2 + $0xf8] sm:$0xff]
        %381 = vset.pattern.permute.xlu0 0
        %382 = vperm.xlu0 %381, %v348
        %v383 = vpop.permute.xlu0 %382
        %386 = vset.pattern.permute.xlu0 0
        %387 = vperm.xlu0 %386, %v349
        %v388 = vpop.permute.xlu0 %387
        %391 = vset.pattern.permute.xlu0 0
        %392 = vperm.xlu0 %391, %v350
        %v393 = vpop.permute.xlu0 %392
        %396 = vset.pattern.permute.xlu0 0
        %397 = vperm.xlu0 %396, %v351
        %v398 = vpop.permute.xlu0 %397
        %401 = vset.pattern.permute.xlu0 0
        %402 = vperm.xlu0 %401, %v352
        %v403 = vpop.permute.xlu0 %402
        %406 = vset.pattern.permute.xlu0 0
        %407 = vperm.xlu0 %406, %v353
        %v408 = vpop.permute.xlu0 %407
        %411 = vset.pattern.permute.xlu0 0
        %412 = vperm.xlu0 %411, %v354
        %v413 = vpop.permute.xlu0 %412
        %416 = vset.pattern.permute.xlu0 0
        %417 = vperm.xlu0 %416, %v355
        %v418 = vpop.permute.xlu0 %417
        %421 = vset.pattern.permute.xlu0 0
        %422 = vperm.xlu0 %421, %v356
        %v423 = vpop.permute.xlu0 %422
        %426 = vset.pattern.permute.xlu0 0
        %427 = vperm.xlu0 %426, %v357
        %v428 = vpop.permute.xlu0 %427
        %431 = vset.pattern.permute.xlu0 0
        %432 = vperm.xlu0 %431, %v358
        %v433 = vpop.permute.xlu0 %432
        %436 = vset.pattern.permute.xlu0 0
        %437 = vperm.xlu0 %436, %v359
        %v438 = vpop.permute.xlu0 %437
        %441 = vset.pattern.permute.xlu0 0
        %442 = vperm.xlu0 %441, %v360
        %v443 = vpop.permute.xlu0 %442
        %446 = vset.pattern.permute.xlu0 0
        %447 = vperm.xlu0 %446, %v361
        %v448 = vpop.permute.xlu0 %447
        %451 = vset.pattern.permute.xlu0 0
        %452 = vperm.xlu0 %451, %v362
        %v453 = vpop.permute.xlu0 %452
        %456 = vset.pattern.permute.xlu0 0
        %457 = vperm.xlu0 %456, %v363
        %v458 = vpop.permute.xlu0 %457
        %461 = vset.pattern.permute.xlu0 0
        %462 = vperm.xlu0 %461, %v364
        %v463 = vpop.permute.xlu0 %462
        %466 = vset.pattern.permute.xlu0 0
        %467 = vperm.xlu0 %466, %v365
        %v468 = vpop.permute.xlu0 %467
        %471 = vset.pattern.permute.xlu0 0
        %472 = vperm.xlu0 %471, %v366
        %v473 = vpop.permute.xlu0 %472
        %476 = vset.pattern.permute.xlu0 0
        %477 = vperm.xlu0 %476, %v367
        %v478 = vpop.permute.xlu0 %477
        %481 = vset.pattern.permute.xlu0 0
        %482 = vperm.xlu0 %481, %v368
        %v483 = vpop.permute.xlu0 %482
        %486 = vset.pattern.permute.xlu0 0
        %487 = vperm.xlu0 %486, %v369
        %v488 = vpop.permute.xlu0 %487
        %491 = vset.pattern.permute.xlu0 0
        %492 = vperm.xlu0 %491, %v370
        %v493 = vpop.permute.xlu0 %492
        %496 = vset.pattern.permute.xlu0 0
        %497 = vperm.xlu0 %496, %v371
        %v498 = vpop.permute.xlu0 %497
        %501 = vset.pattern.permute.xlu0 0
        %502 = vperm.xlu0 %501, %v372
        %v503 = vpop.permute.xlu0 %502
        %506 = vset.pattern.permute.xlu0 0
        %507 = vperm.xlu0 %506, %v373
        %v508 = vpop.permute.xlu0 %507
        %511 = vset.pattern.permute.xlu0 0
        %512 = vperm.xlu0 %511, %v374
        %v513 = vpop.permute.xlu0 %512
        %516 = vset.pattern.permute.xlu0 0
        %517 = vperm.xlu0 %516, %v375
        %v518 = vpop.permute.xlu0 %517
        %521 = vset.pattern.permute.xlu0 0
        %522 = vperm.xlu0 %521, %v376
        %v523 = vpop.permute.xlu0 %522
        %526 = vset.pattern.permute.xlu0 0
        %527 = vperm.xlu0 %526, %v377
        %v528 = vpop.permute.xlu0 %527
        %531 = vset.pattern.permute.xlu0 0
        %532 = vperm.xlu0 %531, %v378
        %v533 = vpop.permute.xlu0 %532
        %536 = vset.pattern.permute.xlu0 0
        %537 = vperm.xlu0 %536, %v379
        %v538 = vpop.permute.xlu0 %537
        %v572 = vunpack.c.l.b16 %v300
        %v573 = vunpack.c.l.b16 %v301
        %v574 = vunpack.c.l.b16 %v302
        %v575 = vunpack.c.l.b16 %v303
        %v576 = vunpack.c.l.b16 %v304
        %v577 = vunpack.c.l.b16 %v305
        %v578 = vunpack.c.l.b16 %v306
        %v579 = vunpack.c.l.b16 %v307
        %v580 = vunpack.c.l.b16 %v308
        %v581 = vunpack.c.l.b16 %v309
        %v582 = vunpack.c.l.b16 %v310
        %v583 = vunpack.c.l.b16 %v311
        %v584 = vunpack.c.l.b16 %v312
        %v585 = vunpack.c.l.b16 %v313
        %v586 = vunpack.c.l.b16 %v314
        %v587 = vunpack.c.l.b16 %v315
        %v588 = vunpack.c.l.b16 %v316
        %v589 = vunpack.c.l.b16 %v317
        %v590 = vunpack.c.l.b16 %v318
        %v591 = vunpack.c.l.b16 %v319
        %v592 = vunpack.c.l.b16 %v320
        %v593 = vunpack.c.l.b16 %v321
        %v594 = vunpack.c.l.b16 %v322
        %v595 = vunpack.c.l.b16 %v323
        %v596 = vunpack.c.l.b16 %v324
        %v597 = vunpack.c.l.b16 %v325
        %v598 = vunpack.c.l.b16 %v326
        %v599 = vunpack.c.l.b16 %v327
        %v600 = vunpack.c.l.b16 %v328
        %v601 = vunpack.c.l.b16 %v329
        %v602 = vunpack.c.l.b16 %v330
        %v603 = vunpack.c.l.b16 %v331
        %v604 = vpack.c.b16 %v573, %v572
        %v605 = vpack.c.b16 %v575, %v574
        %v606 = vpack.c.b16 %v577, %v576
        %v607 = vpack.c.b16 %v579, %v578
        %v608 = vpack.c.b16 %v581, %v580
        %v609 = vpack.c.b16 %v583, %v582
        %v610 = vpack.c.b16 %v585, %v584
        %v611 = vpack.c.b16 %v587, %v586
        %v612 = vpack.c.b16 %v589, %v588
        %v613 = vpack.c.b16 %v591, %v590
        %v614 = vpack.c.b16 %v593, %v592
        %v615 = vpack.c.b16 %v595, %v594
        %v616 = vpack.c.b16 %v597, %v596
        %v617 = vpack.c.b16 %v599, %v598
        %v618 = vpack.c.b16 %v601, %v600
        %v619 = vpack.c.b16 %v603, %v602
        %v636 = vunpack.c.l.b16 %v332
        %v637 = vunpack.c.l.b16 %v333
        %v638 = vunpack.c.l.b16 %v334
        %v639 = vunpack.c.l.b16 %v335
        %v640 = vunpack.c.l.b16 %v336
        %v641 = vunpack.c.l.b16 %v337
        %v642 = vunpack.c.l.b16 %v338
        %v643 = vunpack.c.l.b16 %v339
        %v644 = vunpack.c.l.b16 %v340
        %v645 = vunpack.c.l.b16 %v341
        %v646 = vunpack.c.l.b16 %v342
        %v647 = vunpack.c.l.b16 %v343
        %v648 = vunpack.c.l.b16 %v344
        %v649 = vunpack.c.l.b16 %v345
        %v650 = vunpack.c.l.b16 %v346
        %v651 = vunpack.c.l.b16 %v347
        %v652 = vpack.c.b16 %v637, %v636
        %v653 = vpack.c.b16 %v639, %v638
        %v654 = vpack.c.b16 %v641, %v640
        %v655 = vpack.c.b16 %v643, %v642
        %v656 = vpack.c.b16 %v645, %v644
        %v657 = vpack.c.b16 %v647, %v646
        %v658 = vpack.c.b16 %v649, %v648
        %v659 = vpack.c.b16 %v651, %v650
        %vm660 = vcmask 195584
        %v662 = vsel %vm660, %v604, 0
        %v665 = vsel %vm660, %v605, 0
        %v668 = vsel %vm660, %v606, 0
        %v671 = vsel %vm660, %v607, 0
        %v674 = vsel %vm660, %v608, 0
        %v677 = vsel %vm660, %v609, 0
        %v680 = vsel %vm660, %v610, 0
        %v683 = vsel %vm660, %v611, 0
        %v686 = vsel %vm660, %v612, 0
        %v689 = vsel %vm660, %v613, 0
        %v692 = vsel %vm660, %v614, 0
        %v695 = vsel %vm660, %v615, 0
        %v698 = vsel %vm660, %v616, 0
        %v701 = vsel %vm660, %v617, 0
        %v704 = vsel %vm660, %v618, 0
        %v707 = vsel %vm660, %v619, 0
        %v710 = vsel %vm660, %v652, 0
        %v713 = vsel %vm660, %v653, 0
        %v716 = vsel %vm660, %v654, 0
        %v719 = vsel %vm660, %v655, 0
        %v722 = vsel %vm660, %v656, 0
        %v725 = vsel %vm660, %v657, 0
        %v728 = vsel %vm660, %v658, 0
        %v731 = vsel %vm660, %v659, 0
        %733 = vmatprep.subr.bf16.mxu0 0
        %734 = vmatpush1.bf16.xpose.msra.mxu0 %v710
        %735 = vmatprep.subr.bf16.mxu0 0
        %736 = vmatpush1.bf16.xpose.msra.mxu0 %v713
        %737 = vmatprep.subr.bf16.mxu0 0
        %738 = vmatpush1.bf16.xpose.msra.mxu0 %v716
        %739 = vmatprep.subr.bf16.mxu0 0
        %740 = vmatpush1.bf16.xpose.msra.mxu0 %v719
        %741 = vmatprep.subr.bf16.mxu0 0
        %742 = vmatpush1.bf16.xpose.msra.mxu0 %v722
        %743 = vmatprep.subr.bf16.mxu0 0
        %744 = vmatpush1.bf16.xpose.msra.mxu0 %v725
        %745 = vmatprep.subr.bf16.mxu0 0
        %746 = vmatpush1.bf16.xpose.msra.mxu0 %v728
        %747 = vmatprep.subr.bf16.mxu0 0
        %748 = vmatpush1.bf16.xpose.msra.mxu0 %v731
        %749 = vmatprep.subr.bf16.mxu0 0
        %750 = vmatpush1.bf16.xpose.msra.mxu0 0
        %751 = vmatprep.subr.bf16.mxu0 0
        %752 = vmatpush1.bf16.xpose.msra.mxu0 0
        %753 = vmatprep.subr.bf16.mxu0 0
        %754 = vmatpush1.bf16.xpose.msra.mxu0 0
        %755 = vmatprep.subr.bf16.mxu0 0
        %756 = vmatpush1.bf16.xpose.msra.mxu0 0
        %757 = vmatprep.subr.bf16.mxu0 0
        %758 = vmatpush1.bf16.xpose.msra.mxu0 0
        %759 = vmatprep.subr.bf16.mxu0 0
        %760 = vmatpush1.bf16.xpose.msra.mxu0 0
        %761 = vmatprep.subr.bf16.mxu0 0
        %762 = vmatpush1.bf16.xpose.msra.mxu0 0
        %763 = vmatprep.subr.bf16.mxu0 0
        %764 = vmatpush1.bf16.xpose.msra.mxu0 0
        %765 = vmatprep.mubr.bf16.mxu0 0
        %766 = vmatmul.mubr.bf16.gmra.mrb[0].mxu0 %v662
        %v767 = vpop.f32.mrb[0].mxu0
        %v768 = vadd.f32 %v383, %v767
        %v769 = vpop.f32.mrb[0].mxu0
        %v770 = vpop.f32.mrb[0].mxu0
        %v771 = vadd.f32 %v388, %v770
        %v772 = vpop.f32.mrb[0].mxu0
        %773 = vmatprep.mubr.bf16.mxu0 0
        %774 = vmatmul.mubr.bf16.gmra.mrb[0].mxu0 %v665
        %v775 = vpop.f32.mrb[0].mxu0
        %v776 = vadd.f32 %v393, %v775
        %v777 = vpop.f32.mrb[0].mxu0
        %v778 = vpop.f32.mrb[0].mxu0
        %v779 = vadd.f32 %v398, %v778
        %v780 = vpop.f32.mrb[0].mxu0
        %781 = vmatprep.mubr.bf16.mxu0 0
        %782 = vmatmul.mubr.bf16.gmra.mrb[0].mxu0 %v668
        %v783 = vpop.f32.mrb[0].mxu0
        %v784 = vadd.f32 %v403, %v783
        %v785 = vpop.f32.mrb[0].mxu0
        %v786 = vpop.f32.mrb[0].mxu0
        %v787 = vadd.f32 %v408, %v786
        %v788 = vpop.f32.mrb[0].mxu0
        %789 = vmatprep.mubr.bf16.mxu0 0
        %790 = vmatmul.mubr.bf16.gmra.mrb[0].mxu0 %v671
        %v791 = vpop.f32.mrb[0].mxu0
        %v792 = vadd.f32 %v413, %v791
        %v793 = vpop.f32.mrb[0].mxu0
        %v794 = vpop.f32.mrb[0].mxu0
        %v795 = vadd.f32 %v418, %v794
        %v796 = vpop.f32.mrb[0].mxu0
        %797 = vmatprep.mubr.bf16.mxu0 0
        %798 = vmatmul.mubr.bf16.gmra.mrb[0].mxu0 %v674
        %v799 = vpop.f32.mrb[0].mxu0
        %v800 = vadd.f32 %v423, %v799
        %v801 = vpop.f32.mrb[0].mxu0
        %v802 = vpop.f32.mrb[0].mxu0
        %v803 = vadd.f32 %v428, %v802
        %v804 = vpop.f32.mrb[0].mxu0
        %805 = vmatprep.mubr.bf16.mxu0 0
        %806 = vmatmul.mubr.bf16.gmra.mrb[0].mxu0 %v677
        %v807 = vpop.f32.mrb[0].mxu0
        %v808 = vadd.f32 %v433, %v807
        %v809 = vpop.f32.mrb[0].mxu0
        %v810 = vpop.f32.mrb[0].mxu0
        %v811 = vadd.f32 %v438, %v810
        %v812 = vpop.f32.mrb[0].mxu0
        %813 = vmatprep.mubr.bf16.mxu0 0
        %814 = vmatmul.mubr.bf16.gmra.mrb[0].mxu0 %v680
        %v815 = vpop.f32.mrb[0].mxu0
        %v816 = vadd.f32 %v443, %v815
        %v817 = vpop.f32.mrb[0].mxu0
        %v818 = vpop.f32.mrb[0].mxu0
        %v819 = vadd.f32 %v448, %v818
        %v820 = vpop.f32.mrb[0].mxu0
        %821 = vmatprep.mubr.bf16.mxu0 0
        %822 = vmatmul.mubr.bf16.gmra.mrb[0].mxu0 %v683
        %v823 = vpop.f32.mrb[0].mxu0
        %v824 = vadd.f32 %v453, %v823
        %v825 = vpop.f32.mrb[0].mxu0
        %v826 = vpop.f32.mrb[0].mxu0
        %v827 = vadd.f32 %v458, %v826
        %v828 = vpop.f32.mrb[0].mxu0
        %829 = vmatprep.mubr.bf16.mxu0 0
        %830 = vmatmul.mubr.bf16.gmra.mrb[0].mxu0 %v686
        %v831 = vpop.f32.mrb[0].mxu0
        %v832 = vadd.f32 %v463, %v831
        %v833 = vpop.f32.mrb[0].mxu0
        %v834 = vpop.f32.mrb[0].mxu0
        %v835 = vadd.f32 %v468, %v834
        %v836 = vpop.f32.mrb[0].mxu0
        %837 = vmatprep.mubr.bf16.mxu0 0
        %838 = vmatmul.mubr.bf16.gmra.mrb[0].mxu0 %v689
        %v839 = vpop.f32.mrb[0].mxu0
        %v840 = vadd.f32 %v473, %v839
        %v841 = vpop.f32.mrb[0].mxu0
        %v842 = vpop.f32.mrb[0].mxu0
        %v843 = vadd.f32 %v478, %v842
        %v844 = vpop.f32.mrb[0].mxu0
        %845 = vmatprep.mubr.bf16.mxu0 0
        %846 = vmatmul.mubr.bf16.gmra.mrb[0].mxu0 %v692
        %v847 = vpop.f32.mrb[0].mxu0
        %v848 = vadd.f32 %v483, %v847
        %v849 = vpop.f32.mrb[0].mxu0
        %v850 = vpop.f32.mrb[0].mxu0
        %v851 = vadd.f32 %v488, %v850
        %v852 = vpop.f32.mrb[0].mxu0
        %853 = vmatprep.mubr.bf16.mxu0 0
        %854 = vmatmul.mubr.bf16.gmra.mrb[0].mxu0 %v695
        %v855 = vpop.f32.mrb[0].mxu0
        %v856 = vadd.f32 %v493, %v855
        %v857 = vpop.f32.mrb[0].mxu0
        %v858 = vpop.f32.mrb[0].mxu0
        %v859 = vadd.f32 %v498, %v858
        %v860 = vpop.f32.mrb[0].mxu0
        %861 = vmatprep.mubr.bf16.mxu0 0
        %862 = vmatmul.mubr.bf16.gmra.mrb[0].mxu0 %v698
        %v863 = vpop.f32.mrb[0].mxu0
        %v864 = vadd.f32 %v503, %v863
        %v865 = vpop.f32.mrb[0].mxu0
        %v866 = vpop.f32.mrb[0].mxu0
        %v867 = vadd.f32 %v508, %v866
        %v868 = vpop.f32.mrb[0].mxu0
        %869 = vmatprep.mubr.bf16.mxu0 0
        %870 = vmatmul.mubr.bf16.gmra.mrb[0].mxu0 %v701
        %v871 = vpop.f32.mrb[0].mxu0
        %v872 = vadd.f32 %v513, %v871
        %v873 = vpop.f32.mrb[0].mxu0
        %v874 = vpop.f32.mrb[0].mxu0
        %v875 = vadd.f32 %v518, %v874
        %v876 = vpop.f32.mrb[0].mxu0
        %877 = vmatprep.mubr.bf16.mxu0 0
        %878 = vmatmul.mubr.bf16.gmra.mrb[0].mxu0 %v704
        %v879 = vpop.f32.mrb[0].mxu0
        %v880 = vadd.f32 %v523, %v879
        %v881 = vpop.f32.mrb[0].mxu0
        %v882 = vpop.f32.mrb[0].mxu0
        %v883 = vadd.f32 %v528, %v882
        %v884 = vpop.f32.mrb[0].mxu0
        %885 = vmatprep.mubr.bf16.mxu0 0
        %886 = vmatmul.mubr.bf16.gmra.mrb[0].mxu0 %v707
        %v887 = vpop.f32.mrb[0].mxu0
        %v888 = vadd.f32 %v533, %v887
        %v889 = vpop.f32.mrb[0].mxu0
        %v890 = vpop.f32.mrb[0].mxu0
        %v891 = vadd.f32 %v538, %v890
        %v892 = vpop.f32.mrb[0].mxu0
        %893 = vdwg.mxu0
        %v894 = vmax.f32 %v768, 0.0
        %v895 = vmax.f32 %v771, 0.0
        %v896 = vmax.f32 %v776, 0.0
        %v897 = vmax.f32 %v779, 0.0
        %v898 = vmax.f32 %v784, 0.0
        %v899 = vmax.f32 %v787, 0.0
        %v900 = vmax.f32 %v792, 0.0
        %v901 = vmax.f32 %v795, 0.0
        %v902 = vmax.f32 %v800, 0.0
        %v903 = vmax.f32 %v803, 0.0
        %v904 = vmax.f32 %v808, 0.0
        %v905 = vmax.f32 %v811, 0.0
        %v906 = vmax.f32 %v816, 0.0
        %v907 = vmax.f32 %v819, 0.0
        %v908 = vmax.f32 %v824, 0.0
        %v909 = vmax.f32 %v827, 0.0
        %v910 = vmax.f32 %v832, 0.0
        %v911 = vmax.f32 %v835, 0.0
        %v912 = vmax.f32 %v840, 0.0
        %v913 = vmax.f32 %v843, 0.0
        %v914 = vmax.f32 %v848, 0.0
        %v915 = vmax.f32 %v851, 0.0
        %v916 = vmax.f32 %v856, 0.0
        %v917 = vmax.f32 %v859, 0.0
        %v918 = vmax.f32 %v864, 0.0
        %v919 = vmax.f32 %v867, 0.0
        %v920 = vmax.f32 %v872, 0.0
        %v921 = vmax.f32 %v875, 0.0
        %v922 = vmax.f32 %v880, 0.0
        %v923 = vmax.f32 %v883, 0.0
        %v924 = vmax.f32 %v888, 0.0
        %v925 = vmax.f32 %v891, 0.0
        %v926 = vld [vmem:[%s3] sm:$0xff]
        %v927 = vld [vmem:[%s3 + $0x8] sm:$0xff]
        %v928 = vld [vmem:[%s3 + $0x10] sm:$0xff]
        %v929 = vld [vmem:[%s3 + $0x18] sm:$0xff]
        %v930 = vld [vmem:[%s3 + $0x20] sm:$0xff]
        %v931 = vld [vmem:[%s3 + $0x28] sm:$0xff]
        %v932 = vld [vmem:[%s3 + $0x30] sm:$0xff]
        %v933 = vld [vmem:[%s3 + $0x38] sm:$0xff]
        %v934 = vld [vmem:[%s3 + $0x40] sm:$0xff]
        %v935 = vld [vmem:[%s3 + $0x48] sm:$0xff]
        %v936 = vld [vmem:[%s3 + $0x50] sm:$0xff]
        %v937 = vld [vmem:[%s3 + $0x58] sm:$0xff]
        %v938 = vld [vmem:[%s3 + $0x60] sm:$0xff]
        %v939 = vld [vmem:[%s3 + $0x68] sm:$0xff]
        %v940 = vld [vmem:[%s3 + $0x70] sm:$0xff]
        %v941 = vld [vmem:[%s3 + $0x78] sm:$0xff]
        %v942 = vld [vmem:[%s3 + $0x80] sm:$0xff]
        %v943 = vld [vmem:[%s3 + $0x88] sm:$0xff]
        %v944 = vld [vmem:[%s3 + $0x90] sm:$0xff]
        %v945 = vld [vmem:[%s3 + $0x98] sm:$0xff]
        %v946 = vld [vmem:[%s3 + $0xa0] sm:$0xff]
        %v947 = vld [vmem:[%s3 + $0xa8] sm:$0xff]
        %v948 = vld [vmem:[%s3 + $0xb0] sm:$0xff]
        %v949 = vld [vmem:[%s3 + $0xb8] sm:$0xff]
        %v950 = vld [vmem:[%s3 + $0xc0] sm:$0xff]
        %v951 = vld [vmem:[%s3 + $0xc8] sm:$0xff]
        %v952 = vld [vmem:[%s3 + $0xd0] sm:$0xff]
        %v953 = vld [vmem:[%s3 + $0xd8] sm:$0xff]
        %v954 = vld [vmem:[%s3 + $0xe0] sm:$0xff]
        %v955 = vld [vmem:[%s3 + $0xe8] sm:$0xff]
        %v956 = vld [vmem:[%s3 + $0xf0] sm:$0xff]
        %v957 = vld [vmem:[%s3 + $0xf8] sm:$0xff]
        %v958 = vpack.c.bf16 %v895, %v894
        %v959 = vpack.c.bf16 %v897, %v896
        %v960 = vpack.c.bf16 %v899, %v898
        %v961 = vpack.c.bf16 %v901, %v900
        %v962 = vpack.c.bf16 %v903, %v902
        %v963 = vpack.c.bf16 %v905, %v904
        %v964 = vpack.c.bf16 %v907, %v906
        %v965 = vpack.c.bf16 %v909, %v908
        %v966 = vpack.c.bf16 %v911, %v910
        %v967 = vpack.c.bf16 %v913, %v912
        %v968 = vpack.c.bf16 %v915, %v914
        %v969 = vpack.c.bf16 %v917, %v916
        %v970 = vpack.c.bf16 %v919, %v918
        %v971 = vpack.c.bf16 %v921, %v920
        %v972 = vpack.c.bf16 %v923, %v922
        %v973 = vpack.c.bf16 %v925, %v924
        %v974 = vld [vmem:[%s4] sm:$0xff]
        %v975 = vld [vmem:[%s4 + $0x8] sm:$0xff]
        %v976 = vld [vmem:[%s4 + $0x10] sm:$0xff]
        %v977 = vld [vmem:[%s4 + $0x18] sm:$0xff]
        %v978 = vld [vmem:[%s4 + $0x20] sm:$0xff]
        %v979 = vld [vmem:[%s4 + $0x28] sm:$0xff]
        %v980 = vld [vmem:[%s4 + $0x30] sm:$0xff]
        %v981 = vld [vmem:[%s4 + $0x38] sm:$0xff]
        %v982 = vld [vmem:[%s4 + $0x40] sm:$0xff]
        %v983 = vld [vmem:[%s4 + $0x48] sm:$0xff]
        %v984 = vld [vmem:[%s4 + $0x50] sm:$0xff]
        %v985 = vld [vmem:[%s4 + $0x58] sm:$0xff]
        %v986 = vld [vmem:[%s4 + $0x60] sm:$0xff]
        %v987 = vld [vmem:[%s4 + $0x68] sm:$0xff]
        %v988 = vld [vmem:[%s4 + $0x70] sm:$0xff]
        %v989 = vld [vmem:[%s4 + $0x78] sm:$0xff]
        %v990 = vld [vmem:[%s4 + $0x80] sm:$0xff]
        %v991 = vld [vmem:[%s4 + $0x88] sm:$0xff]
        %v992 = vld [vmem:[%s4 + $0x90] sm:$0xff]
        %v993 = vld [vmem:[%s4 + $0x98] sm:$0xff]
        %v994 = vld [vmem:[%s4 + $0xa0] sm:$0xff]
        %v995 = vld [vmem:[%s4 + $0xa8] sm:$0xff]
        %v996 = vld [vmem:[%s4 + $0xb0] sm:$0xff]
        %v997 = vld [vmem:[%s4 + $0xb8] sm:$0xff]
        %v998 = vld [vmem:[%s4 + $0xc0] sm:$0xff]
        %v999 = vld [vmem:[%s4 + $0xc8] sm:$0xff]
        %v1000 = vld [vmem:[%s4 + $0xd0] sm:$0xff]
        %v1001 = vld [vmem:[%s4 + $0xd8] sm:$0xff]
        %v1002 = vld [vmem:[%s4 + $0xe0] sm:$0xff]
        %v1003 = vld [vmem:[%s4 + $0xe8] sm:$0xff]
        %v1004 = vld [vmem:[%s4 + $0xf0] sm:$0xff]
        %v1005 = vld [vmem:[%s4 + $0xf8] sm:$0xff]
        %1007 = vset.pattern.permute.xlu0 0
        %1008 = vperm.xlu0 %1007, %v974
        %v1009 = vpop.permute.xlu0 %1008
        %1012 = vset.pattern.permute.xlu0 0
        %1013 = vperm.xlu0 %1012, %v975
        %v1014 = vpop.permute.xlu0 %1013
        %1017 = vset.pattern.permute.xlu0 0
        %1018 = vperm.xlu0 %1017, %v976
        %v1019 = vpop.permute.xlu0 %1018
        %1022 = vset.pattern.permute.xlu0 0
        %1023 = vperm.xlu0 %1022, %v977
        %v1024 = vpop.permute.xlu0 %1023
        %1027 = vset.pattern.permute.xlu0 0
        %1028 = vperm.xlu0 %1027, %v978
        %v1029 = vpop.permute.xlu0 %1028
        %1032 = vset.pattern.permute.xlu0 0
        %1033 = vperm.xlu0 %1032, %v979
        %v1034 = vpop.permute.xlu0 %1033
        %1037 = vset.pattern.permute.xlu0 0
        %1038 = vperm.xlu0 %1037, %v980
        %v1039 = vpop.permute.xlu0 %1038
        %1042 = vset.pattern.permute.xlu0 0
        %1043 = vperm.xlu0 %1042, %v981
        %v1044 = vpop.permute.xlu0 %1043
        %1047 = vset.pattern.permute.xlu0 0
        %1048 = vperm.xlu0 %1047, %v982
        %v1049 = vpop.permute.xlu0 %1048
        %1052 = vset.pattern.permute.xlu0 0
        %1053 = vperm.xlu0 %1052, %v983
        %v1054 = vpop.permute.xlu0 %1053
        %1057 = vset.pattern.permute.xlu0 0
        %1058 = vperm.xlu0 %1057, %v984
        %v1059 = vpop.permute.xlu0 %1058
        %1062 = vset.pattern.permute.xlu0 0
        %1063 = vperm.xlu0 %1062, %v985
        %v1064 = vpop.permute.xlu0 %1063
        %1067 = vset.pattern.permute.xlu0 0
        %1068 = vperm.xlu0 %1067, %v986
        %v1069 = vpop.permute.xlu0 %1068
        %1072 = vset.pattern.permute.xlu0 0
        %1073 = vperm.xlu0 %1072, %v987
        %v1074 = vpop.permute.xlu0 %1073
        %1077 = vset.pattern.permute.xlu0 0
        %1078 = vperm.xlu0 %1077, %v988
        %v1079 = vpop.permute.xlu0 %1078
        %1082 = vset.pattern.permute.xlu0 0
        %1083 = vperm.xlu0 %1082, %v989
        %v1084 = vpop.permute.xlu0 %1083
        %1087 = vset.pattern.permute.xlu0 0
        %1088 = vperm.xlu0 %1087, %v990
        %v1089 = vpop.permute.xlu0 %1088
        %1092 = vset.pattern.permute.xlu0 0
        %1093 = vperm.xlu0 %1092, %v991
        %v1094 = vpop.permute.xlu0 %1093
        %1097 = vset.pattern.permute.xlu0 0
        %1098 = vperm.xlu0 %1097, %v992
        %v1099 = vpop.permute.xlu0 %1098
        %1102 = vset.pattern.permute.xlu0 0
        %1103 = vperm.xlu0 %1102, %v993
        %v1104 = vpop.permute.xlu0 %1103
        %1107 = vset.pattern.permute.xlu0 0
        %1108 = vperm.xlu0 %1107, %v994
        %v1109 = vpop.permute.xlu0 %1108
        %1112 = vset.pattern.permute.xlu0 0
        %1113 = vperm.xlu0 %1112, %v995
        %v1114 = vpop.permute.xlu0 %1113
        %1117 = vset.pattern.permute.xlu0 0
        %1118 = vperm.xlu0 %1117, %v996
        %v1119 = vpop.permute.xlu0 %1118
        %1122 = vset.pattern.permute.xlu0 0
        %1123 = vperm.xlu0 %1122, %v997
        %v1124 = vpop.permute.xlu0 %1123
        %1127 = vset.pattern.permute.xlu0 0
        %1128 = vperm.xlu0 %1127, %v998
        %v1129 = vpop.permute.xlu0 %1128
        %1132 = vset.pattern.permute.xlu0 0
        %1133 = vperm.xlu0 %1132, %v999
        %v1134 = vpop.permute.xlu0 %1133
        %1137 = vset.pattern.permute.xlu0 0
        %1138 = vperm.xlu0 %1137, %v1000
        %v1139 = vpop.permute.xlu0 %1138
        %1142 = vset.pattern.permute.xlu0 0
        %1143 = vperm.xlu0 %1142, %v1001
        %v1144 = vpop.permute.xlu0 %1143
        %1147 = vset.pattern.permute.xlu0 0
        %1148 = vperm.xlu0 %1147, %v1002
        %v1149 = vpop.permute.xlu0 %1148
        %1152 = vset.pattern.permute.xlu0 0
        %1153 = vperm.xlu0 %1152, %v1003
        %v1154 = vpop.permute.xlu0 %1153
        %1157 = vset.pattern.permute.xlu0 0
        %1158 = vperm.xlu0 %1157, %v1004
        %v1159 = vpop.permute.xlu0 %1158
        %1162 = vset.pattern.permute.xlu0 0
        %1163 = vperm.xlu0 %1162, %v1005
        %v1164 = vpop.permute.xlu0 %1163
        %v1198 = vunpack.c.l.b16 %v926
        %v1199 = vunpack.c.h.b16 %v926
        %v1200 = vunpack.c.l.b16 %v927
        %v1201 = vunpack.c.h.b16 %v927
        %v1202 = vunpack.c.l.b16 %v928
        %v1203 = vunpack.c.h.b16 %v928
        %v1204 = vunpack.c.l.b16 %v929
        %v1205 = vunpack.c.h.b16 %v929
        %v1206 = vunpack.c.l.b16 %v930
        %v1207 = vunpack.c.h.b16 %v930
        %v1208 = vunpack.c.l.b16 %v931
        %v1209 = vunpack.c.h.b16 %v931
        %v1210 = vunpack.c.l.b16 %v932
        %v1211 = vunpack.c.h.b16 %v932
        %v1212 = vunpack.c.l.b16 %v933
        %v1213 = vunpack.c.h.b16 %v933
        %v1214 = vunpack.c.l.b16 %v934
        %v1215 = vunpack.c.h.b16 %v934
        %v1216 = vunpack.c.l.b16 %v935
        %v1217 = vunpack.c.h.b16 %v935
        %v1218 = vunpack.c.l.b16 %v936
        %v1219 = vunpack.c.h.b16 %v936
        %v1220 = vunpack.c.l.b16 %v937
        %v1221 = vunpack.c.h.b16 %v937
        %v1222 = vunpack.c.l.b16 %v938
        %v1223 = vunpack.c.h.b16 %v938
        %v1224 = vunpack.c.l.b16 %v939
        %v1225 = vunpack.c.h.b16 %v939
        %v1226 = vunpack.c.l.b16 %v940
        %v1227 = vunpack.c.h.b16 %v940
        %v1228 = vunpack.c.l.b16 %v941
        %v1229 = vunpack.c.h.b16 %v941
        %v1230 = vunpack.c.l.b16 %v942
        %v1231 = vunpack.c.h.b16 %v942
        %v1232 = vunpack.c.l.b16 %v943
        %v1233 = vunpack.c.h.b16 %v943
        %v1234 = vunpack.c.l.b16 %v944
        %v1235 = vunpack.c.h.b16 %v944
        %v1236 = vunpack.c.l.b16 %v945
        %v1237 = vunpack.c.h.b16 %v945
        %v1238 = vunpack.c.l.b16 %v946
        %v1239 = vunpack.c.h.b16 %v946
        %v1240 = vunpack.c.l.b16 %v947
        %v1241 = vunpack.c.h.b16 %v947
        %v1242 = vunpack.c.l.b16 %v948
        %v1243 = vunpack.c.h.b16 %v948
        %v1244 = vunpack.c.l.b16 %v949
        %v1245 = vunpack.c.h.b16 %v949
        %v1246 = vunpack.c.l.b16 %v950
        %v1247 = vunpack.c.h.b16 %v950
        %v1248 = vunpack.c.l.b16 %v951
        %v1249 = vunpack.c.h.b16 %v951
        %v1250 = vunpack.c.l.b16 %v952
        %v1251 = vunpack.c.h.b16 %v952
        %v1252 = vunpack.c.l.b16 %v953
        %v1253 = vunpack.c.h.b16 %v953
        %v1254 = vunpack.c.l.b16 %v954
        %v1255 = vunpack.c.h.b16 %v954
        %v1256 = vunpack.c.l.b16 %v955
        %v1257 = vunpack.c.h.b16 %v955
        %v1258 = vunpack.c.l.b16 %v956
        %v1259 = vunpack.c.h.b16 %v956
        %v1260 = vunpack.c.l.b16 %v957
        %v1261 = vunpack.c.h.b16 %v957
        %v1262 = vpack.c.b16 %v1200, %v1198
        %v1263 = vpack.c.b16 %v1201, %v1199
        %v1264 = vpack.c.b16 %v1204, %v1202
        %v1265 = vpack.c.b16 %v1205, %v1203
        %v1266 = vpack.c.b16 %v1208, %v1206
        %v1267 = vpack.c.b16 %v1209, %v1207
        %v1268 = vpack.c.b16 %v1212, %v1210
        %v1269 = vpack.c.b16 %v1213, %v1211
        %v1270 = vpack.c.b16 %v1216, %v1214
        %v1271 = vpack.c.b16 %v1217, %v1215
        %v1272 = vpack.c.b16 %v1220, %v1218
        %v1273 = vpack.c.b16 %v1221, %v1219
        %v1274 = vpack.c.b16 %v1224, %v1222
        %v1275 = vpack.c.b16 %v1225, %v1223
        %v1276 = vpack.c.b16 %v1228, %v1226
        %v1277 = vpack.c.b16 %v1229, %v1227
        %v1278 = vpack.c.b16 %v1232, %v1230
        %v1279 = vpack.c.b16 %v1233, %v1231
        %v1280 = vpack.c.b16 %v1236, %v1234
        %v1281 = vpack.c.b16 %v1237, %v1235
        %v1282 = vpack.c.b16 %v1240, %v1238
        %v1283 = vpack.c.b16 %v1241, %v1239
        %v1284 = vpack.c.b16 %v1244, %v1242
        %v1285 = vpack.c.b16 %v1245, %v1243
        %v1286 = vpack.c.b16 %v1248, %v1246
        %v1287 = vpack.c.b16 %v1249, %v1247
        %v1288 = vpack.c.b16 %v1252, %v1250
        %v1289 = vpack.c.b16 %v1253, %v1251
        %v1290 = vpack.c.b16 %v1256, %v1254
        %v1291 = vpack.c.b16 %v1257, %v1255
        %v1292 = vpack.c.b16 %v1260, %v1258
        %v1293 = vpack.c.b16 %v1261, %v1259
        %1326 = vmatprep.subr.bf16.mxu0 0
        %1327 = vmatpush1.bf16.msra.mxu0 %v958
        %1328 = vmatprep.subr.bf16.mxu0 0
        %1329 = vmatpush1.bf16.msra.mxu0 %v959
        %1330 = vmatprep.subr.bf16.mxu0 0
        %1331 = vmatpush1.bf16.msra.mxu0 %v960
        %1332 = vmatprep.subr.bf16.mxu0 0
        %1333 = vmatpush1.bf16.msra.mxu0 %v961
        %1334 = vmatprep.subr.bf16.mxu0 0
        %1335 = vmatpush1.bf16.msra.mxu0 %v962
        %1336 = vmatprep.subr.bf16.mxu0 0
        %1337 = vmatpush1.bf16.msra.mxu0 %v963
        %1338 = vmatprep.subr.bf16.mxu0 0
        %1339 = vmatpush1.bf16.msra.mxu0 %v964
        %1340 = vmatprep.subr.bf16.mxu0 0
        %1341 = vmatpush1.bf16.msra.mxu0 %v965
        %1342 = vmatprep.subr.bf16.mxu0 0
        %1343 = vmatpush1.bf16.msra.mxu0 %v966
        %1344 = vmatprep.subr.bf16.mxu0 0
        %1345 = vmatpush1.bf16.msra.mxu0 %v967
        %1346 = vmatprep.subr.bf16.mxu0 0
        %1347 = vmatpush1.bf16.msra.mxu0 %v968
        %1348 = vmatprep.subr.bf16.mxu0 0
        %1349 = vmatpush1.bf16.msra.mxu0 %v969
        %1350 = vmatprep.subr.bf16.mxu0 0
        %1351 = vmatpush1.bf16.msra.mxu0 %v970
        %1352 = vmatprep.subr.bf16.mxu0 0
        %1353 = vmatpush1.bf16.msra.mxu0 %v971
        %1354 = vmatprep.subr.bf16.mxu0 0
        %1355 = vmatpush1.bf16.msra.mxu0 %v972
        %1356 = vmatprep.subr.bf16.mxu0 0
        %1357 = vmatpush1.bf16.msra.mxu0 %v973
        %1358 = vmatprep.mubr.bf16.mxu0 %v1263
        %1359 = vmatmul.mubr.bf16.gmra.mrb[0].mxu0 %v1262
        %v1360 = vpop.f32.mrb[0].mxu0
        %v1361 = vadd.f32 %v1009, %v1360
        %v1362 = vpop.f32.mrb[0].mxu0
        %v1363 = vpop.f32.mrb[0].mxu0
        %v1364 = vadd.f32 %v1014, %v1363
        %v1365 = vpop.f32.mrb[0].mxu0
        %1366 = vmatprep.mubr.bf16.mxu0 %v1265
        %1367 = vmatmul.mubr.bf16.gmra.mrb[0].mxu0 %v1264
        %v1368 = vpop.f32.mrb[0].mxu0
        %v1369 = vadd.f32 %v1019, %v1368
        %v1370 = vpop.f32.mrb[0].mxu0
        %v1371 = vpop.f32.mrb[0].mxu0
        %v1372 = vadd.f32 %v1024, %v1371
        %v1373 = vpop.f32.mrb[0].mxu0
        %1374 = vmatprep.mubr.bf16.mxu0 %v1267
        %1375 = vmatmul.mubr.bf16.gmra.mrb[0].mxu0 %v1266
        %v1376 = vpop.f32.mrb[0].mxu0
        %v1377 = vadd.f32 %v1029, %v1376
        %v1378 = vpop.f32.mrb[0].mxu0
        %v1379 = vpop.f32.mrb[0].mxu0
        %v1380 = vadd.f32 %v1034, %v1379
        %v1381 = vpop.f32.mrb[0].mxu0
        %1382 = vmatprep.mubr.bf16.mxu0 %v1269
        %1383 = vmatmul.mubr.bf16.gmra.mrb[0].mxu0 %v1268
        %v1384 = vpop.f32.mrb[0].mxu0
        %v1385 = vadd.f32 %v1039, %v1384
        %v1386 = vpop.f32.mrb[0].mxu0
        %v1387 = vpop.f32.mrb[0].mxu0
        %v1388 = vadd.f32 %v1044, %v1387
        %v1389 = vpop.f32.mrb[0].mxu0
        %1390 = vmatprep.mubr.bf16.mxu0 %v1271
        %1391 = vmatmul.mubr.bf16.gmra.mrb[0].mxu0 %v1270
        %v1392 = vpop.f32.mrb[0].mxu0
        %v1393 = vadd.f32 %v1049, %v1392
        %v1394 = vpop.f32.mrb[0].mxu0
        %v1395 = vpop.f32.mrb[0].mxu0
        %v1396 = vadd.f32 %v1054, %v1395
        %v1397 = vpop.f32.mrb[0].mxu0
        %1398 = vmatprep.mubr.bf16.mxu0 %v1273
        %1399 = vmatmul.mubr.bf16.gmra.mrb[0].mxu0 %v1272
        %v1400 = vpop.f32.mrb[0].mxu0
        %v1401 = vadd.f32 %v1059, %v1400
        %v1402 = vpop.f32.mrb[0].mxu0
        %v1403 = vpop.f32.mrb[0].mxu0
        %v1404 = vadd.f32 %v1064, %v1403
        %v1405 = vpop.f32.mrb[0].mxu0
        %1406 = vmatprep.mubr.bf16.mxu0 %v1275
        %1407 = vmatmul.mubr.bf16.gmra.mrb[0].mxu0 %v1274
        %v1408 = vpop.f32.mrb[0].mxu0
        %v1409 = vadd.f32 %v1069, %v1408
        %v1410 = vpop.f32.mrb[0].mxu0
        %v1411 = vpop.f32.mrb[0].mxu0
        %v1412 = vadd.f32 %v1074, %v1411
        %v1413 = vpop.f32.mrb[0].mxu0
        %1414 = vmatprep.mubr.bf16.mxu0 %v1277
        %1415 = vmatmul.mubr.bf16.gmra.mrb[0].mxu0 %v1276
        %v1416 = vpop.f32.mrb[0].mxu0
        %v1417 = vadd.f32 %v1079, %v1416
        %v1418 = vpop.f32.mrb[0].mxu0
        %v1419 = vpop.f32.mrb[0].mxu0
        %v1420 = vadd.f32 %v1084, %v1419
        %v1421 = vpop.f32.mrb[0].mxu0
        %1422 = vmatprep.mubr.bf16.mxu0 %v1279
        %1423 = vmatmul.mubr.bf16.gmra.mrb[0].mxu0 %v1278
        %v1424 = vpop.f32.mrb[0].mxu0
        %v1425 = vadd.f32 %v1089, %v1424
        %v1426 = vpop.f32.mrb[0].mxu0
        %v1427 = vpop.f32.mrb[0].mxu0
        %v1428 = vadd.f32 %v1094, %v1427
        %v1429 = vpop.f32.mrb[0].mxu0
        %1430 = vmatprep.mubr.bf16.mxu0 %v1281
        %1431 = vmatmul.mubr.bf16.gmra.mrb[0].mxu0 %v1280
        %v1432 = vpop.f32.mrb[0].mxu0
        %v1433 = vadd.f32 %v1099, %v1432
        %v1434 = vpop.f32.mrb[0].mxu0
        %v1435 = vpop.f32.mrb[0].mxu0
        %v1436 = vadd.f32 %v1104, %v1435
        %v1437 = vpop.f32.mrb[0].mxu0
        %1438 = vmatprep.mubr.bf16.mxu0 %v1283
        %1439 = vmatmul.mubr.bf16.gmra.mrb[0].mxu0 %v1282
        %v1440 = vpop.f32.mrb[0].mxu0
        %v1441 = vadd.f32 %v1109, %v1440
        %v1442 = vpop.f32.mrb[0].mxu0
        %v1443 = vpop.f32.mrb[0].mxu0
        %v1444 = vadd.f32 %v1114, %v1443
        %v1445 = vpop.f32.mrb[0].mxu0
        %1446 = vmatprep.mubr.bf16.mxu0 %v1285
        %1447 = vmatmul.mubr.bf16.gmra.mrb[0].mxu0 %v1284
        %v1448 = vpop.f32.mrb[0].mxu0
        %v1449 = vadd.f32 %v1119, %v1448
        %v1450 = vpop.f32.mrb[0].mxu0
        %v1451 = vpop.f32.mrb[0].mxu0
        %v1452 = vadd.f32 %v1124, %v1451
        %v1453 = vpop.f32.mrb[0].mxu0
        %1454 = vmatprep.mubr.bf16.mxu0 %v1287
        %1455 = vmatmul.mubr.bf16.gmra.mrb[0].mxu0 %v1286
        %v1456 = vpop.f32.mrb[0].mxu0
        %v1457 = vadd.f32 %v1129, %v1456
        %v1458 = vpop.f32.mrb[0].mxu0
        %v1459 = vpop.f32.mrb[0].mxu0
        %v1460 = vadd.f32 %v1134, %v1459
        %v1461 = vpop.f32.mrb[0].mxu0
        %1462 = vmatprep.mubr.bf16.mxu0 %v1289
        %1463 = vmatmul.mubr.bf16.gmra.mrb[0].mxu0 %v1288
        %v1464 = vpop.f32.mrb[0].mxu0
        %v1465 = vadd.f32 %v1139, %v1464
        %v1466 = vpop.f32.mrb[0].mxu0
        %v1467 = vpop.f32.mrb[0].mxu0
        %v1468 = vadd.f32 %v1144, %v1467
        %v1469 = vpop.f32.mrb[0].mxu0
        %1470 = vmatprep.mubr.bf16.mxu0 %v1291
        %1471 = vmatmul.mubr.bf16.gmra.mrb[0].mxu0 %v1290
        %v1472 = vpop.f32.mrb[0].mxu0
        %v1473 = vadd.f32 %v1149, %v1472
        %v1474 = vpop.f32.mrb[0].mxu0
        %v1475 = vpop.f32.mrb[0].mxu0
        %v1476 = vadd.f32 %v1154, %v1475
        %v1477 = vpop.f32.mrb[0].mxu0
        %1478 = vmatprep.mubr.bf16.mxu0 %v1293
        %1479 = vmatmul.mubr.bf16.gmra.mrb[0].mxu0 %v1292
        %v1480 = vpop.f32.mrb[0].mxu0
        %v1481 = vadd.f32 %v1159, %v1480
        %v1482 = vpop.f32.mrb[0].mxu0
        %v1483 = vpop.f32.mrb[0].mxu0
        %v1484 = vadd.f32 %v1164, %v1483
        %v1485 = vpop.f32.mrb[0].mxu0
        %1486 = vdwg.mxu0
        %v1487 = vmax.f32 %v1361, 0.0
        %v1488 = vmax.f32 %v1364, 0.0
        %v1489 = vmax.f32 %v1369, 0.0
        %v1490 = vmax.f32 %v1372, 0.0
        %v1491 = vmax.f32 %v1377, 0.0
        %v1492 = vmax.f32 %v1380, 0.0
        %v1493 = vmax.f32 %v1385, 0.0
        %v1494 = vmax.f32 %v1388, 0.0
        %v1495 = vmax.f32 %v1393, 0.0
        %v1496 = vmax.f32 %v1396, 0.0
        %v1497 = vmax.f32 %v1401, 0.0
        %v1498 = vmax.f32 %v1404, 0.0
        %v1499 = vmax.f32 %v1409, 0.0
        %v1500 = vmax.f32 %v1412, 0.0
        %v1501 = vmax.f32 %v1417, 0.0
        %v1502 = vmax.f32 %v1420, 0.0
        %v1503 = vmax.f32 %v1425, 0.0
        %v1504 = vmax.f32 %v1428, 0.0
        %v1505 = vmax.f32 %v1433, 0.0
        %v1506 = vmax.f32 %v1436, 0.0
        %v1507 = vmax.f32 %v1441, 0.0
        %v1508 = vmax.f32 %v1444, 0.0
        %v1509 = vmax.f32 %v1449, 0.0
        %v1510 = vmax.f32 %v1452, 0.0
        %v1511 = vmax.f32 %v1457, 0.0
        %v1512 = vmax.f32 %v1460, 0.0
        %v1513 = vmax.f32 %v1465, 0.0
        %v1514 = vmax.f32 %v1468, 0.0
        %v1515 = vmax.f32 %v1473, 0.0
        %v1516 = vmax.f32 %v1476, 0.0
        %v1517 = vmax.f32 %v1481, 0.0
        %v1518 = vmax.f32 %v1484, 0.0
        %v1519 = vld [vmem:[%s5] sm:$0x3]
        %v1520 = vpack.c.bf16 %v1488, %v1487
        %v1521 = vpack.c.bf16 %v1490, %v1489
        %v1522 = vpack.c.bf16 %v1492, %v1491
        %v1523 = vpack.c.bf16 %v1494, %v1493
        %v1524 = vpack.c.bf16 %v1496, %v1495
        %v1525 = vpack.c.bf16 %v1498, %v1497
        %v1526 = vpack.c.bf16 %v1500, %v1499
        %v1527 = vpack.c.bf16 %v1502, %v1501
        %v1528 = vpack.c.bf16 %v1504, %v1503
        %v1529 = vpack.c.bf16 %v1506, %v1505
        %v1530 = vpack.c.bf16 %v1508, %v1507
        %v1531 = vpack.c.bf16 %v1510, %v1509
        %v1532 = vpack.c.bf16 %v1512, %v1511
        %v1533 = vpack.c.bf16 %v1514, %v1513
        %v1534 = vpack.c.bf16 %v1516, %v1515
        %v1535 = vpack.c.bf16 %v1518, %v1517
        %s1536 = sld [smem:[#allocation2]]
        %v1537 = vstv %s1536
        %v1540 = vunpack.c.l.s4 1966171168
        %v1541 = vunpack.c.0.s8 %v1540
        %v1542 = vlaneseq
        %v1543 = vshrl.u32 %v1542, 7
        %v1544 = vsub.s32 %v1541, %v1543
        %v1545 = vrot.slane %v1519, %v1544
        %v1546 = vcombine.high %v1545, %v1545
        %v1548 = vunpack.c.l.s4 1966171168
        %v1549 = vunpack.c.0.s8 %v1548
        %v1550 = vlaneseq
        %v1551 = vshrl.u32 %v1550, 7
        %v1552 = vsub.s32 %v1549, %v1551
        %v1553 = vrot.slane %v1545, %v1552
        %v1555 = vunpack.c.l.s4 1966171168
        %v1556 = vunpack.c.0.s8 %v1555
        %v1557 = vlaneseq
        %v1558 = vshrl.u32 %v1557, 7
        %v1559 = vsub.s32 %v1556, %v1558
        %v1560 = vrot.slane %v1546, %v1559
        %1563 = vmatprep.subr.bf16.mxu0 0
        %1564 = vmatpush1.bf16.msra.mxu0 %v1520
        %1565 = vmatprep.subr.bf16.mxu0 0
        %1566 = vmatpush1.bf16.msra.mxu0 %v1521
        %1567 = vmatprep.subr.bf16.mxu0 0
        %1568 = vmatpush1.bf16.msra.mxu0 %v1522
        %1569 = vmatprep.subr.bf16.mxu0 0
        %1570 = vmatpush1.bf16.msra.mxu0 %v1523
        %1571 = vmatprep.subr.bf16.mxu0 0
        %1572 = vmatpush1.bf16.msra.mxu0 %v1524
        %1573 = vmatprep.subr.bf16.mxu0 0
        %1574 = vmatpush1.bf16.msra.mxu0 %v1525
        %1575 = vmatprep.subr.bf16.mxu0 0
        %1576 = vmatpush1.bf16.msra.mxu0 %v1526
        %1577 = vmatprep.subr.bf16.mxu0 0
        %1578 = vmatpush1.bf16.msra.mxu0 %v1527
        %1579 = vmatprep.subr.bf16.mxu0 0
        %1580 = vmatpush1.bf16.msra.mxu0 %v1528
        %1581 = vmatprep.subr.bf16.mxu0 0
        %1582 = vmatpush1.bf16.msra.mxu0 %v1529
        %1583 = vmatprep.subr.bf16.mxu0 0
        %1584 = vmatpush1.bf16.msra.mxu0 %v1530
        %1585 = vmatprep.subr.bf16.mxu0 0
        %1586 = vmatpush1.bf16.msra.mxu0 %v1531
        %1587 = vmatprep.subr.bf16.mxu0 0
        %1588 = vmatpush1.bf16.msra.mxu0 %v1532
        %1589 = vmatprep.subr.bf16.mxu0 0
        %1590 = vmatpush1.bf16.msra.mxu0 %v1533
        %1591 = vmatprep.subr.bf16.mxu0 0
        %1592 = vmatpush1.bf16.msra.mxu0 %v1534
        %1593 = vmatprep.subr.bf16.mxu0 0
        %1594 = vmatpush1.bf16.msra.mxu0 %v1535
        %1595 = vmatprep.mubr.bf16.mxu0 %v1560
        %1596 = vmatmul.mubr.bf16.gmra.mrb[0].mxu0 %v1553
        %v1597 = vpop.f32.mrb[0].mxu0
        %v1598 = vadd.f32 %v1537, %v1597
        %v1599 = vpop.f32.mrb[0].mxu0
        %v1600 = vpop.f32.mrb[0].mxu0
        %v1601 = vpop.f32.mrb[0].mxu0
        %1602 = vdwg.mxu0
        %1603 = vst [vmem:[%s284] sm:$0x1] %v1598
        %s1604 = sand.u32 %s182, 1
        %s1605 = scalar_lea.sflag [#allocation4], %s1604
        %s1606 = sand.u32 %s182, 1
        %s1607 = scalar_lea.vmem [#allocation3], %s1606
        // Predicated region
        $region49: #{skill_qnet_forward.1} parent=47 // pred_check
          %p1608 = pneg %p192
        $region50: #{skill_qnet_forward.1} parent=47 // pred_check_branch
          %1610 = sbr.rel (%p1608) target = $region52
        $region51: #{skill_qnet_forward.1} parent=47 // pred_region
          %s1612 = ssub.s32 16, 16
          %1613 = vsyncadd %s1605, %s1612
          %s1614 = smul.addr %s22, 16
          %s1615 = scalar_lea.hbm %s7, %s1614
          %s1617 = sshll.u32 %s1607, 4
          %s1618 = int_to_ptr.vmem [resolvable:$true] %s1617
          %1620 = dma.vmem_to_hbm [thread:$0]  %s1618, 16, %s1615, %s1605
        $region52: #{skill_qnet_forward.1} parent=47 // pred_fallthru
          _
      $region48: #{skill_qnet_forward.1} parent=5 // pred_fallthru
        _
      %p1621 = scmp.le.s32.totalorder 2, %s17
      // Predicated region
      $region53: #{skill_qnet_forward.1} parent=5 // pred_check
        %p1622 = pneg %p1621
      $region54: #{skill_qnet_forward.1} parent=5 // pred_check_branch
        %1624 = sbr.rel (%p1622) target = $region56
      $region55: #{skill_qnet_forward.1} parent=5 // pred_region
        %s1625 = ssub.s32 %s17, 2
        // Predicated region
        $region57: #{skill_qnet_forward.1} parent=55 // pred_check
          %p1626 = pneg %p198
        $region58: #{skill_qnet_forward.1} parent=55 // pred_check_branch
          %1628 = sbr.rel (%p1626) target = $region60
        $region59: #{skill_qnet_forward.1} parent=55 // pred_region
          %s1629 = sand.u32 %s183, 1
          %s1630 = scalar_lea.sflag [#allocation4], %s1629
          %s1631 = sand.u32 %s183, 1
          %s1632 = scalar_lea.vmem [#allocation3], %s1631
          %1633 = dma.done %s1630, 16
        $region60: #{skill_qnet_forward.1} parent=55 // pred_fallthru
          _
      $region56: #{skill_qnet_forward.1} parent=5 // pred_fallthru
        _
    $region6: #{skill_qnet_forward.1} parent=1 // loop_footer
      %s21 = sadd.s32 1, %s17
    $region7: #{skill_qnet_forward.1} parent=1 // loop_footer_branch
      %16 = sbr.rel target = $region3
    $region8: #{skill_qnet_forward.1} parent=1 // loop_exit
      _
    %1634 = vsyncpa [#allocation4], 1
    %s1635 = scalar_lea.sflag [#allocation4], 1
    %1636 = vsyncpa %s1635, 1

</llo_original>
